<compile_context>
chip_gen: v6e
topology: v6e:2x2x1
jax: 0.10.0
libtpu: 0.0.40
codegen_flags: <defaults>
</compile_context>

<pallas_src>
import math

import jax
import jax.numpy as jnp
from jax.experimental import pallas as pl
from jax.experimental.pallas import tpu as pltpu

ALPHA = 0.2          # LeakyReLU negative slope (the module's `alpha`)
NEG_BIG = -9e15      # mask value from the reference implementation
LANES = 128          # TPU lane width; output feature dim padded to a multiple


# ---------------------------------------------------------------------------
# Kernel A: projection.  Per row block computes Wh, Wh@a1 and Wh@a2 exactly
# once (no per-block recomputation of the full-graph projection).
# ---------------------------------------------------------------------------
def proj_kernel(h_ref, w_ref, a_ref, wh_ref, wh1_ref, wh2t_ref):
    wh = jnp.dot(h_ref[...], w_ref[...],
                 preferred_element_type=jnp.float32)            # [TM, Fp] f32
    # Fused attention projections: one width-2 matmul against [a1 | a2].
    wh12 = jnp.dot(wh, a_ref[...],
                   preferred_element_type=jnp.float32)          # [TM, 2]
    wh_ref[...] = wh.astype(wh_ref.dtype)                       # bf16 store
    wh1_ref[...] = wh12[:, 0:1]                                 # [TM, 1] column
    wh2t_ref[...] = wh12[:, 1:2].T                              # [1, TM] row (lane-dense)


# ---------------------------------------------------------------------------
# Kernel B: attention.  Per row block: logits + masked row softmax + att @ Wh.
# Rows are independent -> "parallel" grid axis.
# ---------------------------------------------------------------------------
def attn_kernel(wh1_ref, wh2t_ref, adj_ref, wh_ref, o_ref):
    # Attention logits: [TM,1] + [1,N] broadcast add, then LeakyReLU.
    e = wh1_ref[...] + wh2t_ref[...]                            # [TM, N]
    e = jnp.maximum(e, ALPHA * e)                               # LeakyReLU (alpha < 1)

    # Adjacency mask (int8 in HBM) -> one fused select.
    mask = adj_ref[...].astype(jnp.int32) > 0
    att = jnp.where(mask, e, NEG_BIG)

    # Numerically stable row softmax; denominator via EUP approx reciprocal.
    att_max = jnp.max(att, axis=1, keepdims=True)
    att_exp = jnp.exp(att - att_max)
    denom = jnp.sum(att_exp, axis=1, keepdims=True)
    att = att_exp * pl.reciprocal(denom, approx=True)

    # TODO(synk): dropout on `attention` is a no-op in eval mode (training=False).

    # Aggregation on the MXU: bf16 operands, f32 accumulation.
    h_prime = jnp.dot(att.astype(jnp.bfloat16), wh_ref[...],
                      preferred_element_type=jnp.float32)       # [TM, Fp]

    # concat=True -> ELU (alpha=1.0).  Clamp the exp argument so the
    # unselected branch can never overflow.  Lane-dense store (Fp % 128 == 0).
    neg = jnp.exp(jnp.minimum(h_prime, 0.0)) - 1.0
    o_ref[...] = jnp.where(h_prime > 0, h_prime, neg)


def gat_layer(h, adj, W, a, *, block_rows=128):
    """GAT forward. h: [N, F_in] f32, adj: [N, N], W: [F_in, F_out], a: [2*F_out, 1]."""
    n, f_in = h.shape
    f_out = W.shape[1]

    # Zero-pad the output feature dim to a multiple of 128 lanes.  Padded W /
    # a rows contribute exact zeros; padded output columns are sliced off.
    f_pad = max(LANES, ((f_out + LANES - 1) // LANES) * LANES)
    w_pad = jnp.zeros((f_in, f_pad), jnp.float32).at[:, :f_out].set(W)
    a_mat = jnp.zeros((f_pad, 2), jnp.float32)
    a_mat = a_mat.at[:f_out, 0].set(a[:f_out, 0])      # a1
    a_mat = a_mat.at[:f_out, 1].set(a[f_out:, 0])      # a2

    # Adjacency only gates the mask -> ship as int8 (4x less HBM traffic).
    adj_i8 = (adj > 0).astype(jnp.int8)

    tm = min(block_rows, n)
    assert n % tm == 0, "N must be a multiple of the row-block size"
    assert tm % 32 == 0, "row block must satisfy the int8 (32, 128) tile"
    grid = (n // tm,)

    # ---- Kernel A: Wh (bf16), wh1 [N,1], wh2^T [1,N] -----------------------
    wh, wh1, wh2t = pl.pallas_call(
        proj_kernel,
        out_shape=(
            jax.ShapeDtypeStruct((n, f_pad), jnp.bfloat16),
            jax.ShapeDtypeStruct((n, 1), jnp.float32),
            jax.ShapeDtypeStruct((1, n), jnp.float32),
        ),
        grid=grid,
        in_specs=[
            pl.BlockSpec((tm, f_in), lambda i: (i, 0)),      # h row block
            pl.BlockSpec((f_in, f_pad), lambda i: (0, 0)),   # W (lane-padded)
            pl.BlockSpec((f_pad, 2), lambda i: (0, 0)),      # [a1 | a2]
        ],
        out_specs=(
            pl.BlockSpec((tm, f_pad), lambda i: (i, 0)),     # Wh row block
            pl.BlockSpec((tm, 1), lambda i: (i, 0)),         # wh1 column block
            pl.BlockSpec((1, tm), lambda i: (0, i)),         # wh2^T row block
        ),
        compiler_params=pltpu.CompilerParams(
            dimension_semantics=("parallel",)),
    )(h, w_pad, a_mat)

    # ---- Kernel B: masked softmax + aggregation ----------------------------
    out = pl.pallas_call(
        attn_kernel,
        out_shape=jax.ShapeDtypeStruct((n, f_pad), jnp.float32),
        grid=grid,
        in_specs=[
            pl.BlockSpec((tm, 1), lambda i: (i, 0)),         # wh1 row block
            pl.BlockSpec((1, n), lambda i: (0, 0)),          # wh2^T (full, resident)
            pl.BlockSpec((tm, n), lambda i: (i, 0)),         # adj row block (int8)
            pl.BlockSpec((n, f_pad), lambda i: (0, 0)),      # Wh (full, bf16, resident)
        ],
        out_specs=pl.BlockSpec((tm, f_pad), lambda i: (i, 0)),
        compiler_params=pltpu.CompilerParams(
            # Row blocks are independent -> shard across v7x's 2 TensorCores.
            dimension_semantics=("parallel",),
            # NOTE: for large N, raise block_rows (512-1024 on v5e/v6e,
            # <=256 on v7x's 64 MiB VMEM) and set vmem_limit_bytes here.
        ),
    )(wh1, wh2t, adj_i8, wh)
    return out[:, :f_out]


def reference_gat(h, adj, W, a):
    """Pure-JAX f32 reference mirroring the PyTorch forward (eval mode)."""
    f_out = W.shape[1]
    wh = h @ W
    wh1 = wh @ a[:f_out, :]
    wh2 = wh @ a[f_out:, :]
    e = wh1 + wh2.T
    e = jnp.where(e > 0, e, ALPHA * e)
    att = jnp.where(adj > 0, e, NEG_BIG)
    att = jax.nn.softmax(att, axis=1)
    h_prime = att @ wh
    return jnp.where(h_prime > 0, h_prime, jnp.exp(h_prime) - 1.0)


if __name__ == "__main__":
    N = 256          # number of graph nodes (2 row blocks of 128)
    F_IN = 64        # in_features
    F_OUT = 32       # out_features

    key = jax.random.PRNGKey(0)
    k_h, k_adj, k_w, k_a = jax.random.split(key, 4)

    # node features
    h = jax.random.normal(k_h, (N, F_IN), dtype=jnp.float32)

    # random sparse-ish adjacency with self-loops
    adj = (jax.random.uniform(k_adj, (N, N)) < 0.2).astype(jnp.float32)
    adj = jnp.maximum(adj, jnp.eye(N, dtype=jnp.float32))

    # parameters (xavier-uniform style init, gain=1.14 for W)
    gain = 1.14
    lim_w = gain * math.sqrt(6.0 / (F_IN + F_OUT))
    W = jax.random.uniform(k_w, (F_IN, F_OUT), minval=-lim_w, maxval=lim_w,
                           dtype=jnp.float32)
    lim_a = math.sqrt(6.0 / (2 * F_OUT + 1))
    a = jax.random.uniform(k_a, (2 * F_OUT, 1), minval=-lim_a, maxval=lim_a,
                           dtype=jnp.float32)

    out = gat_layer(h, adj, W, a)
    out = jax.block_until_ready(out)

    ref = reference_gat(h, adj, W, a)
    assert out.shape == (N, F_OUT)
    # Tolerance loosened vs pure-f32 because of bf16 MXU operands (Wh stored in
    # bf16) + approx reciprocal; f32 accumulation keeps drift at ~1e-3.
    assert jnp.allclose(out, ref, atol=3e-2, rtol=3e-2), (
        float(jnp.max(jnp.abs(out - ref))))

    print("KERNEL_OK")
</pallas_src>

<mosaic_0001>
module attributes {stable_mosaic.version = 11 : i64} {
  func.func @proj_kernel(%arg0: i32, %arg1: memref<128x64xf32, #tpu.memory_space<vmem>>, %arg2: memref<64x128xf32, #tpu.memory_space<vmem>>, %arg3: memref<128x2xf32, #tpu.memory_space<vmem>>, %arg4: memref<128x128xbf16, #tpu.memory_space<vmem>>, %arg5: memref<128x1xf32, #tpu.memory_space<vmem>>, %arg6: memref<1x128xf32, #tpu.memory_space<vmem>>) attributes {dimension_semantics = [#tpu.dimension_semantics<parallel>], iteration_bounds = array<i64: 2>, scalar_prefetch = 0 : i64, scratch_operands = 0 : i64, tpu.core_type = #tpu.core_type<tc>, window_params = [{transform_indices = @transform_0, window_bounds = array<i64: 128, 64>}, {pipeline_mode = #tpu.pipeline_mode<synchronous>, transform_indices = @transform_1, window_bounds = array<i64: 64, 128>}, {pipeline_mode = #tpu.pipeline_mode<synchronous>, transform_indices = @transform_2, window_bounds = array<i64: 128, 2>}, {transform_indices = @transform_3, window_bounds = array<i64: 128, 128>}, {transform_indices = @transform_4, window_bounds = array<i64: 128, 1>}, {transform_indices = @transform_5, window_bounds = array<i64: 1, 128>}]} {
    %c0 = arith.constant 0 : index
    %c0_0 = arith.constant 0 : index
    %0 = vector.load %arg1[%c0, %c0_0] : memref<128x64xf32, #tpu.memory_space<vmem>>, vector<128x64xf32>
    %c0_1 = arith.constant 0 : index
    %c0_2 = arith.constant 0 : index
    %1 = vector.load %arg2[%c0_1, %c0_2] : memref<64x128xf32, #tpu.memory_space<vmem>>, vector<64x128xf32>
    %cst = arith.constant dense<0.000000e+00> : vector<128x128xf32>
    %2 = tpu.matmul %0, %1, %cst {dimension_numbers = #tpu.dot_dimension_numbers<[1], [0], [0], [1], [0, 0, 1, 1], [], []>} : vector<128x64xf32>, vector<64x128xf32>, vector<128x128xf32> -> vector<128x128xf32>
    %c0_3 = arith.constant 0 : index
    %c0_4 = arith.constant 0 : index
    %3 = vector.load %arg3[%c0_3, %c0_4] : memref<128x2xf32, #tpu.memory_space<vmem>>, vector<128x2xf32>
    %cst_5 = arith.constant dense<0.000000e+00> : vector<128x2xf32>
    %4 = tpu.matmul %2, %3, %cst_5 {dimension_numbers = #tpu.dot_dimension_numbers<[1], [0], [0], [1], [0, 0, 1, 1], [], []>} : vector<128x128xf32>, vector<128x2xf32>, vector<128x2xf32> -> vector<128x2xf32>
    %5 = arith.truncf %2 : vector<128x128xf32> to vector<128x128xbf16>
    %c0_6 = arith.constant 0 : index
    %c0_7 = arith.constant 0 : index
    %6 = vector.load %arg4[%c0_6, %c0_7] : memref<128x128xbf16, #tpu.memory_space<vmem>>, vector<128x128xbf16>
    tpu.vector_store %arg4[%c0_6, %c0_7], %5 {strides = array<i32>} : memref<128x128xbf16, #tpu.memory_space<vmem>>, vector<128x128xbf16>,
    %7 = vector.extract_strided_slice %4 {offsets = [0, 0], sizes = [128, 1], strides = [1, 1]} : vector<128x2xf32> to vector<128x1xf32>
    %c0_8 = arith.constant 0 : index
    %c0_9 = arith.constant 0 : index
    %8 = vector.load %arg5[%c0_8, %c0_9] : memref<128x1xf32, #tpu.memory_space<vmem>>, vector<128x1xf32>
    tpu.vector_store %arg5[%c0_8, %c0_9], %7 {strides = array<i32>} : memref<128x1xf32, #tpu.memory_space<vmem>>, vector<128x1xf32>,
    %9 = vector.extract_strided_slice %4 {offsets = [0, 1], sizes = [128, 1], strides = [1, 1]} : vector<128x2xf32> to vector<128x1xf32>
    %10 = tpu.transpose %9, [1, 0] : vector<128x1xf32> -> vector<1x128xf32>
    %c0_10 = arith.constant 0 : index
    %c0_11 = arith.constant 0 : index
    %11 = vector.load %arg6[%c0_10, %c0_11] : memref<1x128xf32, #tpu.memory_space<vmem>>, vector<1x128xf32>
    tpu.vector_store %arg6[%c0_10, %c0_11], %10 {strides = array<i32>} : memref<1x128xf32, #tpu.memory_space<vmem>>, vector<1x128xf32>,
    return
  }
  func.func @transform_0(%arg0: i32) -> (i32, i32) {
    %c0_i32 = arith.constant 0 : i32
    %c0_i32_0 = arith.constant 0 : i32
    return %arg0, %c0_i32 : i32, i32
  }
  func.func @transform_1(%arg0: i32) -> (i32, i32) {
    %c0_i32 = arith.constant 0 : i32
    %c0_i32_0 = arith.constant 0 : i32
    %c0_i32_1 = arith.constant 0 : i32
    return %c0_i32, %c0_i32_0 : i32, i32
  }
  func.func @transform_2(%arg0: i32) -> (i32, i32) {
    %c0_i32 = arith.constant 0 : i32
    %c0_i32_0 = arith.constant 0 : i32
    %c0_i32_1 = arith.constant 0 : i32
    return %c0_i32, %c0_i32_0 : i32, i32
  }
  func.func @transform_3(%arg0: i32) -> (i32, i32) {
    %c0_i32 = arith.constant 0 : i32
    %c0_i32_0 = arith.constant 0 : i32
    return %arg0, %c0_i32 : i32, i32
  }
  func.func @transform_4(%arg0: i32) -> (i32, i32) {
    %c0_i32 = arith.constant 0 : i32
    %c0_i32_0 = arith.constant 0 : i32
    return %arg0, %c0_i32 : i32, i32
  }
  func.func @transform_5(%arg0: i32) -> (i32, i32) {
    %c0_i32 = arith.constant 0 : i32
    %c0_i32_0 = arith.constant 0 : i32
    return %c0_i32, %arg0 : i32, i32
  }
}

</mosaic_0001>

<llo_original>
// kernel: tpu_custom_call.1
$region0: #{tpu_custom_call.1}
  #allocation0 [shape = 'u32[]', space=smem, size = 0x4, offset = 0x4, fixed_abs, tag = 'smem constant byte address 0x4 - core index']
  #allocation1 [shape = 'u32[144,128]{1,0:T(1,128)}', space=vmem, size = 0x12000, scoped, tag = 'internal scratch']
  %s0 = inlined_call_operand.vmem [shape: f32[256,64], index: 0, kind: input, shape index: {}]
  %s1 = inlined_call_operand.vmem [shape: f32[64,128], index: 1, kind: input, shape index: {}]
  %s2 = inlined_call_operand.vmem [shape: f32[128,2], index: 2, kind: input, shape index: {}]
  %s3 = inlined_call_operand.hbm [shape: bf16[256,128], index: 3, kind: output, shape index: {0}]
  %s4 = inlined_call_operand.vmem [shape: f32[256,1], index: 4, kind: output, shape index: {1}]
  %s5 = inlined_call_operand.hbm [shape: f32[1,256], index: 5, kind: output, shape index: {2}]
  %6 = xla_tuple %s3, %s4, %s5
  %s7 = sld [smem:[#allocation0]]
  $region61: #{tpu_custom_call.1} parent=0
    _
  %s9 = ssub.s32 1, %s7
  %s10 = scalar_select 0, %s9, %s7
  $region1: #{tpu_custom_call.1} parent=0
    #allocation2 [shape = 'u8[65536]{0}', space=vmem, size = 0x10000, scoped, tag = 'output window, operand 0']
    #allocation3 [shape = 's32[2]{0}', space=sflag, size = 0x8, scoped, tag = 'scoped memory for tpu_custom_call.1']
    #allocation4 [shape = 'u8[1024]{0}', space=vmem, size = 0x400, scoped, tag = 'output window, operand 2']
    #allocation5 [shape = 's32[2]{0}', space=sflag, size = 0x8, scoped, tag = 'scoped memory for tpu_custom_call.1']
    %11 = vsyncpa [#allocation3], 0
    %s12 = scalar_lea.sflag [#allocation3], 1
    %13 = vsyncpa %s12, 0
    %14 = vsyncpa [#allocation5], 0
    %s15 = scalar_lea.sflag [#allocation5], 1
    %16 = vsyncpa %s15, 0
    loop: start=0, step=1, limit=4
    $region2: #{tpu_custom_call.1} parent=1 // loop_pre_header
      _
    $region3: #{tpu_custom_call.1} parent=1 // loop_header
      %s18 = sphi 0, %s22
      %p19 = scmp.ge.s32.totalorder %s18, 4
      %s28 = sphi 0, %s30
      %s31 = sphi 0, %s28
      %s32 = sphi 0, %s31
      %s48 = sphi 0, %s32
      %s52 = sphi 0, %s52
      %s54 = sphi 0, %s52
      %s55 = sphi 0, %s54
      %s69 = sphi 0, %s55
      %s73 = sphi 0, %s73
      %s75 = sphi 0, %s73
      %s76 = sphi 0, %s75
      %s90 = sphi 0, %s76
      %s96 = sphi 0, %s98
      %s99 = sphi 0, %s96
      %s100 = sphi 0, %s99
      %s116 = sphi 0, %s100
      %s122 = sphi 0, %s124
      %s125 = sphi 0, %s122
      %s126 = sphi 0, %s125
      %s142 = sphi 0, %s126
      %s148 = sphi 0, %s150
      %s151 = sphi 0, %s148
      %s152 = sphi 0, %s151
      %s168 = sphi 0, %s152
    $region4: #{tpu_custom_call.1} parent=1 // loop_header_branch
      %21 = sbr.rel (%p19) target = $region8
    $region5: #{tpu_custom_call.1} parent=1 // loop_body
      %s23 = ssub.s32 %s18, 1
      %s24 = ssub.s32 %s18, 2
      %s25 = sadd.s32 %s18, 1
      %s26 = ssub.s32 %s18, %s25
      %p27 = scmp.eq.s32.totalorder %s26, 0
      %s29 = sadd.s32 %s28, 1
      %s30 = scalar_select %p27, %s28, %s29
      %p33 = pneg %p27
      %p34 = scmp.eq.s32.totalorder %s18, 1
      %p35 = por %p33, %p34
      %p36 = scmp.ne.s32.totalorder %s28, %s31
      %p37 = scmp.eq.s32.totalorder %s18, 0
      %p38 = por %p36, %p37
      %p39 = scmp.ne.s32.totalorder %s28, %s31
      %p40 = scmp.eq.s32.totalorder %s23, 1
      %p41 = por %p39, %p40
      %p42 = scmp.ne.s32.totalorder %s31, %s32
      %p43 = scmp.eq.s32.totalorder %s23, 0
      %p44 = por %p42, %p43
      %p45 = scmp.ne.s32.totalorder %s31, %s32
      %p46 = scmp.eq.s32.totalorder %s24, 1
      %p47 = por %p45, %p46
      %p49 = scmp.ne.s32.totalorder %s32, %s48
      %p50 = scmp.eq.s32.totalorder %s24, 0
      %p51 = por %p49, %p50
      %s53 = sadd.s32 %s52, 1
      %p56 = scmp.eq.s32.totalorder %s18, 1
      %p57 = scmp.ne.s32.totalorder %s52, %s54
      %p58 = scmp.eq.s32.totalorder %s18, 0
      %p59 = por %p57, %p58
      %p60 = scmp.ne.s32.totalorder %s52, %s54
      %p61 = scmp.eq.s32.totalorder %s23, 1
      %p62 = por %p60, %p61
      %p63 = scmp.ne.s32.totalorder %s54, %s55
      %p64 = scmp.eq.s32.totalorder %s23, 0
      %p65 = por %p63, %p64
      %p66 = scmp.ne.s32.totalorder %s54, %s55
      %p67 = scmp.eq.s32.totalorder %s24, 1
      %p68 = por %p66, %p67
      %p70 = scmp.ne.s32.totalorder %s55, %s69
      %p71 = scmp.eq.s32.totalorder %s24, 0
      %p72 = por %p70, %p71
      %s74 = sadd.s32 %s73, 1
      %p77 = scmp.eq.s32.totalorder %s18, 1
      %p78 = scmp.ne.s32.totalorder %s73, %s75
      %p79 = scmp.eq.s32.totalorder %s18, 0
      %p80 = por %p78, %p79
      %p81 = scmp.ne.s32.totalorder %s73, %s75
      %p82 = scmp.eq.s32.totalorder %s23, 1
      %p83 = por %p81, %p82
      %p84 = scmp.ne.s32.totalorder %s75, %s76
      %p85 = scmp.eq.s32.totalorder %s23, 0
      %p86 = por %p84, %p85
      %p87 = scmp.ne.s32.totalorder %s75, %s76
      %p88 = scmp.eq.s32.totalorder %s24, 1
      %p89 = por %p87, %p88
      %p91 = scmp.ne.s32.totalorder %s76, %s90
      %p92 = scmp.eq.s32.totalorder %s24, 0
      %p93 = por %p91, %p92
      %s94 = ssub.s32 %s18, %s25
      %p95 = scmp.eq.s32.totalorder %s94, 0
      %s97 = sadd.s32 %s96, 1
      %s98 = scalar_select %p95, %s96, %s97
      %p101 = pneg %p95
      %p102 = scmp.eq.s32.totalorder %s18, 1
      %p103 = por %p101, %p102
      %p104 = scmp.ne.s32.totalorder %s96, %s99
      %p105 = scmp.eq.s32.totalorder %s18, 0
      %p106 = por %p104, %p105
      %p107 = scmp.ne.s32.totalorder %s96, %s99
      %p108 = scmp.eq.s32.totalorder %s23, 1
      %p109 = por %p107, %p108
      %p110 = scmp.ne.s32.totalorder %s99, %s100
      %p111 = scmp.eq.s32.totalorder %s23, 0
      %p112 = por %p110, %p111
      %p113 = scmp.ne.s32.totalorder %s99, %s100
      %p114 = scmp.eq.s32.totalorder %s24, 1
      %p115 = por %p113, %p114
      %p117 = scmp.ne.s32.totalorder %s100, %s116
      %p118 = scmp.eq.s32.totalorder %s24, 0
      %p119 = por %p117, %p118
      %s120 = ssub.s32 %s18, %s25
      %p121 = scmp.eq.s32.totalorder %s120, 0
      %s123 = sadd.s32 %s122, 1
      %s124 = scalar_select %p121, %s122, %s123
      %p127 = pneg %p121
      %p128 = scmp.eq.s32.totalorder %s18, 1
      %p129 = por %p127, %p128
      %p130 = scmp.ne.s32.totalorder %s122, %s125
      %p131 = scmp.eq.s32.totalorder %s18, 0
      %p132 = por %p130, %p131
      %p133 = scmp.ne.s32.totalorder %s122, %s125
      %p134 = scmp.eq.s32.totalorder %s23, 1
      %p135 = por %p133, %p134
      %p136 = scmp.ne.s32.totalorder %s125, %s126
      %p137 = scmp.eq.s32.totalorder %s23, 0
      %p138 = por %p136, %p137
      %p139 = scmp.ne.s32.totalorder %s125, %s126
      %p140 = scmp.eq.s32.totalorder %s24, 1
      %p141 = por %p139, %p140
      %p143 = scmp.ne.s32.totalorder %s126, %s142
      %p144 = scmp.eq.s32.totalorder %s24, 0
      %p145 = por %p143, %p144
      %s146 = ssub.s32 %s18, %s25
      %p147 = scmp.eq.s32.totalorder %s146, 0
      %s149 = sadd.s32 %s148, 1
      %s150 = scalar_select %p147, %s148, %s149
      %p153 = pneg %p147
      %p154 = scmp.eq.s32.totalorder %s18, 1
      %p155 = por %p153, %p154
      %p156 = scmp.ne.s32.totalorder %s148, %s151
      %p157 = scmp.eq.s32.totalorder %s18, 0
      %p158 = por %p156, %p157
      %p159 = scmp.ne.s32.totalorder %s148, %s151
      %p160 = scmp.eq.s32.totalorder %s23, 1
      %p161 = por %p159, %p160
      %p162 = scmp.ne.s32.totalorder %s151, %s152
      %p163 = scmp.eq.s32.totalorder %s23, 0
      %p164 = por %p162, %p163
      %p165 = scmp.ne.s32.totalorder %s151, %s152
      %p166 = scmp.eq.s32.totalorder %s24, 1
      %p167 = por %p165, %p166
      %p169 = scmp.ne.s32.totalorder %s152, %s168
      %p170 = scmp.eq.s32.totalorder %s24, 0
      %p171 = por %p169, %p170
      %p172 = scmp.le.s32.totalorder 1, %s18
      %p173 = scmp.lt.s32.totalorder %s18, 3
      %p174 = pnand %p172, %p173
      %p175 = pneg %p174
      // Predicated region
      $region9: #{tpu_custom_call.1} parent=5 // pred_check
        _
      $region10: #{tpu_custom_call.1} parent=5 // pred_check_branch
        %177 = sbr.rel (%p174) target = $region12
      $region11: #{tpu_custom_call.1} parent=5 // pred_region
        %s178 = ssub.s32 %s18, 1
        // Predicated region
        $region13: #{tpu_custom_call.1} parent=11 // pred_check
          %p179 = pneg %p65
        $region14: #{tpu_custom_call.1} parent=11 // pred_check_branch
          %181 = sbr.rel (%p179) target = $region16
        $region15: #{tpu_custom_call.1} parent=11 // pred_region
          _
        $region16: #{tpu_custom_call.1} parent=11 // pred_fallthru
          _
        // Predicated region
        $region17: #{tpu_custom_call.1} parent=11 // pred_check
          %p182 = pneg %p86
        $region18: #{tpu_custom_call.1} parent=11 // pred_check_branch
          %184 = sbr.rel (%p182) target = $region20
        $region19: #{tpu_custom_call.1} parent=11 // pred_region
          _
        $region20: #{tpu_custom_call.1} parent=11 // pred_fallthru
          _
      $region12: #{tpu_custom_call.1} parent=5 // pred_fallthru
        _
      %p185 = scmp.lt.s32.totalorder %s18, 2
      // Predicated region
      $region21: #{tpu_custom_call.1} parent=5 // pred_check
        %p186 = pneg %p185
      $region22: #{tpu_custom_call.1} parent=5 // pred_check_branch
        %188 = sbr.rel (%p186) target = $region24
      $region23: #{tpu_custom_call.1} parent=5 // pred_region
        // Predicated region
        $region25: #{tpu_custom_call.1} parent=23 // pred_check
          %p189 = pneg %p38
        $region26: #{tpu_custom_call.1} parent=23 // pred_check_branch
          %191 = sbr.rel (%p189) target = $region28
        $region27: #{tpu_custom_call.1} parent=23 // pred_region
          %s192 = smul.u32 16, %s18
          %p193 = scmp.lt.s32.totalorder %s192, 31
          %s194 = scalar_select %p193, %s192, 31
          %s195 = smul.addr %s194, 8
          %s196 = scalar_lea.vmem %s0, %s195
          %s197 = smul.u32 16, %s18
        $region28: #{tpu_custom_call.1} parent=23 // pred_fallthru
          _
      $region24: #{tpu_custom_call.1} parent=5 // pred_fallthru
        _
      %p198 = scmp.le.s32.totalorder 1, %s18
      %p199 = scmp.lt.s32.totalorder %s18, 3
      %p200 = pnand %p198, %p199
      %p201 = pneg %p200
      // Predicated region
      $region29: #{tpu_custom_call.1} parent=5 // pred_check
        _
      $region30: #{tpu_custom_call.1} parent=5 // pred_check_branch
        %203 = sbr.rel (%p200) target = $region32
      $region31: #{tpu_custom_call.1} parent=5 // pred_region
        %s204 = ssub.s32 %s18, 1
        %s205 = smul.u32 16, %s23
        %p206 = scmp.lt.s32.totalorder %s205, 31
        %s207 = scalar_select %p206, %s205, 31
        %s208 = smul.addr %s207, 8
        %s209 = scalar_lea.vmem %s0, %s208
        %p210 = pneg %p44
        %p211 = pneg %p41
        %p212 = pneg %p65
        %p213 = pneg %p62
        %p214 = pneg %p86
        %p215 = pneg %p83
        %p216 = pneg %p112
        %p217 = pneg %p109
        %s218 = sand.u32 %s99, 1
        %s219 = scalar_lea.sflag [#allocation3], %s218
        %s220 = sand.u32 %s99, 1
        %s221 = smul.addr %s220, 64
        %s222 = scalar_lea.vmem [#allocation2], %s221
        %p223 = pneg %p138
        %p224 = pneg %p135
        %s225 = smul.u32 16, %s23
        %p226 = scmp.lt.s32.totalorder %s225, 31
        %s227 = scalar_select %p226, %s225, 31
        %s228 = smul.addr %s227, 8
        %s229 = scalar_lea.vmem %s4, %s228
        %p230 = pneg %p164
        %p231 = pneg %p161
        %s232 = sand.u32 %s151, 1
        %s233 = scalar_lea.sflag [#allocation5], %s232
        %s234 = sand.u32 %s151, 1
        %s235 = scalar_lea.vmem [#allocation4], %s234
        %s236 = smul.u32 16, %s23
        %p237 = scmp.lt.s32.totalorder %s236, 31
        %s238 = scalar_select %p237, %s236, 31
        %s239 = smul.addr %s238, 8
        %s240 = scalar_lea.vmem %s0, %s239
        %s241 = smul.u32 16, %s23
        %s242 = smul.u32 16, %s23
        %s243 = smul.u32 16, %s23
        %p244 = scmp.lt.s32.totalorder %s243, 31
        %s245 = scalar_select %p244, %s243, 31
        %s246 = smul.addr %s245, 8
        %s247 = scalar_lea.vmem %s4, %s246
        %s248 = smul.u32 16, %s23
        %v249 = vld [vmem:[%s240] sm:$0xff]
        %v250 = vld [vmem:[%s240 + $0x8] sm:$0xff]
        %v251 = vld [vmem:[%s240 + $0x10] sm:$0xff]
        %v252 = vld [vmem:[%s240 + $0x18] sm:$0xff]
        %v253 = vld [vmem:[%s240 + $0x20] sm:$0xff]
        %v254 = vld [vmem:[%s240 + $0x28] sm:$0xff]
        %v255 = vld [vmem:[%s240 + $0x30] sm:$0xff]
        %v256 = vld [vmem:[%s240 + $0x38] sm:$0xff]
        %v257 = vld [vmem:[%s240 + $0x40] sm:$0xff]
        %v258 = vld [vmem:[%s240 + $0x48] sm:$0xff]
        %v259 = vld [vmem:[%s240 + $0x50] sm:$0xff]
        %v260 = vld [vmem:[%s240 + $0x58] sm:$0xff]
        %v261 = vld [vmem:[%s240 + $0x60] sm:$0xff]
        %v262 = vld [vmem:[%s240 + $0x68] sm:$0xff]
        %v263 = vld [vmem:[%s240 + $0x70] sm:$0xff]
        %v264 = vld [vmem:[%s240 + $0x78] sm:$0xff]
        %v265 = vld [vmem:[%s1] sm:$0xff]
        %v266 = vld [vmem:[%s1 + $0x8] sm:$0xff]
        %v267 = vld [vmem:[%s1 + $0x10] sm:$0xff]
        %v268 = vld [vmem:[%s1 + $0x18] sm:$0xff]
        %v269 = vld [vmem:[%s1 + $0x20] sm:$0xff]
        %v270 = vld [vmem:[%s1 + $0x28] sm:$0xff]
        %v271 = vld [vmem:[%s1 + $0x30] sm:$0xff]
        %v272 = vld [vmem:[%s1 + $0x38] sm:$0xff]
        %vm273 = vcmask 523264
        %v275 = vsel %vm273, %v249, 0
        %v278 = vsel %vm273, %v250, 0
        %v281 = vsel %vm273, %v251, 0
        %v284 = vsel %vm273, %v252, 0
        %v287 = vsel %vm273, %v253, 0
        %v290 = vsel %vm273, %v254, 0
        %v293 = vsel %vm273, %v255, 0
        %v296 = vsel %vm273, %v256, 0
        %v299 = vsel %vm273, %v257, 0
        %v302 = vsel %vm273, %v258, 0
        %v305 = vsel %vm273, %v259, 0
        %v308 = vsel %vm273, %v260, 0
        %v311 = vsel %vm273, %v261, 0
        %v314 = vsel %vm273, %v262, 0
        %v317 = vsel %vm273, %v263, 0
        %v320 = vsel %vm273, %v264, 0
        %322 = vmatprep.subr.mxu0 0.0
        %323 = vmatpush1.msra.mxu0 0.0
        %324 = vmatprep.subr.mxu0 0.0
        %325 = vmatpush1.msra.mxu0 0.0
        %326 = vmatprep.subr.mxu0 0.0
        %327 = vmatpush1.msra.mxu0 0.0
        %328 = vmatprep.subr.mxu0 0.0
        %329 = vmatpush1.msra.mxu0 0.0
        %330 = vmatprep.subr.mxu0 0.0
        %331 = vmatpush1.msra.mxu0 0.0
        %332 = vmatprep.subr.mxu0 0.0
        %333 = vmatpush1.msra.mxu0 0.0
        %334 = vmatprep.subr.mxu0 0.0
        %335 = vmatpush1.msra.mxu0 0.0
        %336 = vmatprep.subr.mxu0 0.0
        %337 = vmatpush1.msra.mxu0 0.0
        %338 = vmatprep.subr.mxu0 0.0
        %339 = vmatpush1.msra.mxu0 %v272
        %340 = vmatprep.subr.mxu0 0.0
        %341 = vmatpush1.msra.mxu0 %v271
        %342 = vmatprep.subr.mxu0 0.0
        %343 = vmatpush1.msra.mxu0 %v270
        %344 = vmatprep.subr.mxu0 0.0
        %345 = vmatpush1.msra.mxu0 %v269
        %346 = vmatprep.subr.mxu0 0.0
        %347 = vmatpush1.msra.mxu0 %v268
        %348 = vmatprep.subr.mxu0 0.0
        %349 = vmatpush1.msra.mxu0 %v267
        %350 = vmatprep.subr.mxu0 0.0
        %351 = vmatpush1.msra.mxu0 %v266
        %352 = vmatprep.subr.mxu0 0.0
        %353 = vmatpush1.msra.mxu0 %v265
        %354 = vmatprep.subr.mxu0 0.0
        %355 = vmatpush2.msra.mxu0 0.0
        %356 = vmatprep.subr.mxu0 0.0
        %357 = vmatpush2.msra.mxu0 0.0
        %358 = vmatprep.subr.mxu0 0.0
        %359 = vmatpush2.msra.mxu0 0.0
        %360 = vmatprep.subr.mxu0 0.0
        %361 = vmatpush2.msra.mxu0 0.0
        %362 = vmatprep.subr.mxu0 0.0
        %363 = vmatpush2.msra.mxu0 0.0
        %364 = vmatprep.subr.mxu0 0.0
        %365 = vmatpush2.msra.mxu0 0.0
        %366 = vmatprep.subr.mxu0 0.0
        %367 = vmatpush2.msra.mxu0 0.0
        %368 = vmatprep.subr.mxu0 0.0
        %369 = vmatpush2.msra.mxu0 0.0
        %370 = vmatprep.subr.mxu0 0.0
        %371 = vmatpush2.msra.mxu0 0.0
        %372 = vmatprep.subr.mxu0 0.0
        %373 = vmatpush2.msra.mxu0 0.0
        %374 = vmatprep.subr.mxu0 0.0
        %375 = vmatpush2.msra.mxu0 0.0
        %376 = vmatprep.subr.mxu0 0.0
        %377 = vmatpush2.msra.mxu0 0.0
        %378 = vmatprep.subr.mxu0 0.0
        %379 = vmatpush2.msra.mxu0 0.0
        %380 = vmatprep.subr.mxu0 0.0
        %381 = vmatpush2.msra.mxu0 0.0
        %382 = vmatprep.subr.mxu0 0.0
        %383 = vmatpush2.msra.mxu0 0.0
        %384 = vmatprep.subr.mxu0 0.0
        %385 = vmatpush2.msra.mxu0 0.0
        %386 = vmatprep.mubr.f32.mxu0 0.0
        %387 = vmatmul.mubr.f32.gmra.mxu0 %v275
        %v388 = vpop.f32.mrf.mxu0
        %v389 = vadd.f32 0.0, %v388
        %v390 = vpop.f32.mrf.mxu0
        %391 = vmatprep.mubr.f32.mxu0 0.0
        %392 = vmatmul.mubr.f32.gmra.mxu0 %v278
        %v393 = vpop.f32.mrf.mxu0
        %v394 = vadd.f32 0.0, %v393
        %v395 = vpop.f32.mrf.mxu0
        %396 = vmatprep.mubr.f32.mxu0 0.0
        %397 = vmatmul.mubr.f32.gmra.mxu0 %v281
        %v398 = vpop.f32.mrf.mxu0
        %v399 = vadd.f32 0.0, %v398
        %v400 = vpop.f32.mrf.mxu0
        %401 = vmatprep.mubr.f32.mxu0 0.0
        %402 = vmatmul.mubr.f32.gmra.mxu0 %v284
        %v403 = vpop.f32.mrf.mxu0
        %v404 = vadd.f32 0.0, %v403
        %v405 = vpop.f32.mrf.mxu0
        %406 = vmatprep.mubr.f32.mxu0 0.0
        %407 = vmatmul.mubr.f32.gmra.mxu0 %v287
        %v408 = vpop.f32.mrf.mxu0
        %v409 = vadd.f32 0.0, %v408
        %v410 = vpop.f32.mrf.mxu0
        %411 = vmatprep.mubr.f32.mxu0 0.0
        %412 = vmatmul.mubr.f32.gmra.mxu0 %v290
        %v413 = vpop.f32.mrf.mxu0
        %v414 = vadd.f32 0.0, %v413
        %v415 = vpop.f32.mrf.mxu0
        %416 = vmatprep.mubr.f32.mxu0 0.0
        %417 = vmatmul.mubr.f32.gmra.mxu0 %v293
        %v418 = vpop.f32.mrf.mxu0
        %v419 = vadd.f32 0.0, %v418
        %v420 = vpop.f32.mrf.mxu0
        %421 = vmatprep.mubr.f32.mxu0 0.0
        %422 = vmatmul.mubr.f32.gmra.mxu0 %v296
        %v423 = vpop.f32.mrf.mxu0
        %v424 = vadd.f32 0.0, %v423
        %v425 = vpop.f32.mrf.mxu0
        %426 = vmatprep.mubr.f32.mxu0 0.0
        %427 = vmatmul.mubr.f32.gmra.mxu0 %v299
        %v428 = vpop.f32.mrf.mxu0
        %v429 = vadd.f32 0.0, %v428
        %v430 = vpop.f32.mrf.mxu0
        %431 = vmatprep.mubr.f32.mxu0 0.0
        %432 = vmatmul.mubr.f32.gmra.mxu0 %v302
        %v433 = vpop.f32.mrf.mxu0
        %v434 = vadd.f32 0.0, %v433
        %v435 = vpop.f32.mrf.mxu0
        %436 = vmatprep.mubr.f32.mxu0 0.0
        %437 = vmatmul.mubr.f32.gmra.mxu0 %v305
        %v438 = vpop.f32.mrf.mxu0
        %v439 = vadd.f32 0.0, %v438
        %v440 = vpop.f32.mrf.mxu0
        %441 = vmatprep.mubr.f32.mxu0 0.0
        %442 = vmatmul.mubr.f32.gmra.mxu0 %v308
        %v443 = vpop.f32.mrf.mxu0
        %v444 = vadd.f32 0.0, %v443
        %v445 = vpop.f32.mrf.mxu0
        %446 = vmatprep.mubr.f32.mxu0 0.0
        %447 = vmatmul.mubr.f32.gmra.mxu0 %v311
        %v448 = vpop.f32.mrf.mxu0
        %v449 = vadd.f32 0.0, %v448
        %v450 = vpop.f32.mrf.mxu0
        %451 = vmatprep.mubr.f32.mxu0 0.0
        %452 = vmatmul.mubr.f32.gmra.mxu0 %v314
        %v453 = vpop.f32.mrf.mxu0
        %v454 = vadd.f32 0.0, %v453
        %v455 = vpop.f32.mrf.mxu0
        %456 = vmatprep.mubr.f32.mxu0 0.0
        %457 = vmatmul.mubr.f32.gmra.mxu0 %v317
        %v458 = vpop.f32.mrf.mxu0
        %v459 = vadd.f32 0.0, %v458
        %v460 = vpop.f32.mrf.mxu0
        %461 = vmatprep.mubr.f32.mxu0 0.0
        %462 = vmatmul.mubr.f32.gmra.mxu0 %v320
        %v463 = vpop.f32.mrf.mxu0
        %v464 = vadd.f32 0.0, %v463
        %v465 = vpop.f32.mrf.mxu0
        %466 = vdwg.mxu0
        %v467 = vld [vmem:[%s2] sm:$0xff]
        %v468 = vld [vmem:[%s2 + $0x8] sm:$0xff]
        %v469 = vld [vmem:[%s2 + $0x10] sm:$0xff]
        %v470 = vld [vmem:[%s2 + $0x18] sm:$0xff]
        %v471 = vld [vmem:[%s2 + $0x20] sm:$0xff]
        %v472 = vld [vmem:[%s2 + $0x28] sm:$0xff]
        %v473 = vld [vmem:[%s2 + $0x30] sm:$0xff]
        %v474 = vld [vmem:[%s2 + $0x38] sm:$0xff]
        %v475 = vld [vmem:[%s2 + $0x40] sm:$0xff]
        %v476 = vld [vmem:[%s2 + $0x48] sm:$0xff]
        %v477 = vld [vmem:[%s2 + $0x50] sm:$0xff]
        %v478 = vld [vmem:[%s2 + $0x58] sm:$0xff]
        %v479 = vld [vmem:[%s2 + $0x60] sm:$0xff]
        %v480 = vld [vmem:[%s2 + $0x68] sm:$0xff]
        %v481 = vld [vmem:[%s2 + $0x70] sm:$0xff]
        %v482 = vld [vmem:[%s2 + $0x78] sm:$0xff]
        %483 = vmatprep.subr.mxu0 0.0
        %484 = vmatpush1.msra.mxu0 %v482
        %485 = vmatprep.subr.mxu0 0.0
        %486 = vmatpush1.msra.mxu0 %v481
        %487 = vmatprep.subr.mxu0 0.0
        %488 = vmatpush1.msra.mxu0 %v480
        %489 = vmatprep.subr.mxu0 0.0
        %490 = vmatpush1.msra.mxu0 %v479
        %491 = vmatprep.subr.mxu0 0.0
        %492 = vmatpush1.msra.mxu0 %v478
        %493 = vmatprep.subr.mxu0 0.0
        %494 = vmatpush1.msra.mxu0 %v477
        %495 = vmatprep.subr.mxu0 0.0
        %496 = vmatpush1.msra.mxu0 %v476
        %497 = vmatprep.subr.mxu0 0.0
        %498 = vmatpush1.msra.mxu0 %v475
        %499 = vmatprep.subr.mxu0 0.0
        %500 = vmatpush1.msra.mxu0 %v474
        %501 = vmatprep.subr.mxu0 0.0
        %502 = vmatpush1.msra.mxu0 %v473
        %503 = vmatprep.subr.mxu0 0.0
        %504 = vmatpush1.msra.mxu0 %v472
        %505 = vmatprep.subr.mxu0 0.0
        %506 = vmatpush1.msra.mxu0 %v471
        %507 = vmatprep.subr.mxu0 0.0
        %508 = vmatpush1.msra.mxu0 %v470
        %509 = vmatprep.subr.mxu0 0.0
        %510 = vmatpush1.msra.mxu0 %v469
        %511 = vmatprep.subr.mxu0 0.0
        %512 = vmatpush1.msra.mxu0 %v468
        %513 = vmatprep.subr.mxu0 0.0
        %514 = vmatpush1.msra.mxu0 %v467
        %515 = vmatprep.subr.mxu0 0.0
        %516 = vmatpush2.msra.mxu0 0.0
        %517 = vmatprep.subr.mxu0 0.0
        %518 = vmatpush2.msra.mxu0 0.0
        %519 = vmatprep.subr.mxu0 0.0
        %520 = vmatpush2.msra.mxu0 0.0
        %521 = vmatprep.subr.mxu0 0.0
        %522 = vmatpush2.msra.mxu0 0.0
        %523 = vmatprep.subr.mxu0 0.0
        %524 = vmatpush2.msra.mxu0 0.0
        %525 = vmatprep.subr.mxu0 0.0
        %526 = vmatpush2.msra.mxu0 0.0
        %527 = vmatprep.subr.mxu0 0.0
        %528 = vmatpush2.msra.mxu0 0.0
        %529 = vmatprep.subr.mxu0 0.0
        %530 = vmatpush2.msra.mxu0 0.0
        %531 = vmatprep.subr.mxu0 0.0
        %532 = vmatpush2.msra.mxu0 0.0
        %533 = vmatprep.subr.mxu0 0.0
        %534 = vmatpush2.msra.mxu0 0.0
        %535 = vmatprep.subr.mxu0 0.0
        %536 = vmatpush2.msra.mxu0 0.0
        %537 = vmatprep.subr.mxu0 0.0
        %538 = vmatpush2.msra.mxu0 0.0
        %539 = vmatprep.subr.mxu0 0.0
        %540 = vmatpush2.msra.mxu0 0.0
        %541 = vmatprep.subr.mxu0 0.0
        %542 = vmatpush2.msra.mxu0 0.0
        %543 = vmatprep.subr.mxu0 0.0
        %544 = vmatpush2.msra.mxu0 0.0
        %545 = vmatprep.subr.mxu0 0.0
        %546 = vmatpush2.msra.mxu0 0.0
        %547 = vmatprep.mubr.f32.mxu0 0.0
        %548 = vmatmul.mubr.f32.gmra.mxu0 %v389
        %v549 = vpop.f32.mrf.mxu0
        %v550 = vadd.f32 0.0, %v549
        %v551 = vpop.f32.mrf.mxu0
        %552 = vmatprep.mubr.f32.mxu0 0.0
        %553 = vmatmul.mubr.f32.gmra.mxu0 %v394
        %v554 = vpop.f32.mrf.mxu0
        %v555 = vadd.f32 0.0, %v554
        %v556 = vpop.f32.mrf.mxu0
        %557 = vmatprep.mubr.f32.mxu0 0.0
        %558 = vmatmul.mubr.f32.gmra.mxu0 %v399
        %v559 = vpop.f32.mrf.mxu0
        %v560 = vadd.f32 0.0, %v559
        %v561 = vpop.f32.mrf.mxu0
        %562 = vmatprep.mubr.f32.mxu0 0.0
        %563 = vmatmul.mubr.f32.gmra.mxu0 %v404
        %v564 = vpop.f32.mrf.mxu0
        %v565 = vadd.f32 0.0, %v564
        %v566 = vpop.f32.mrf.mxu0
        %567 = vmatprep.mubr.f32.mxu0 0.0
        %568 = vmatmul.mubr.f32.gmra.mxu0 %v409
        %v569 = vpop.f32.mrf.mxu0
        %v570 = vadd.f32 0.0, %v569
        %v571 = vpop.f32.mrf.mxu0
        %572 = vmatprep.mubr.f32.mxu0 0.0
        %573 = vmatmul.mubr.f32.gmra.mxu0 %v414
        %v574 = vpop.f32.mrf.mxu0
        %v575 = vadd.f32 0.0, %v574
        %v576 = vpop.f32.mrf.mxu0
        %577 = vmatprep.mubr.f32.mxu0 0.0
        %578 = vmatmul.mubr.f32.gmra.mxu0 %v419
        %v579 = vpop.f32.mrf.mxu0
        %v580 = vadd.f32 0.0, %v579
        %v581 = vpop.f32.mrf.mxu0
        %582 = vmatprep.mubr.f32.mxu0 0.0
        %583 = vmatmul.mubr.f32.gmra.mxu0 %v424
        %v584 = vpop.f32.mrf.mxu0
        %v585 = vadd.f32 0.0, %v584
        %v586 = vpop.f32.mrf.mxu0
        %587 = vmatprep.mubr.f32.mxu0 0.0
        %588 = vmatmul.mubr.f32.gmra.mxu0 %v429
        %v589 = vpop.f32.mrf.mxu0
        %v590 = vadd.f32 0.0, %v589
        %v591 = vpop.f32.mrf.mxu0
        %592 = vmatprep.mubr.f32.mxu0 0.0
        %593 = vmatmul.mubr.f32.gmra.mxu0 %v434
        %v594 = vpop.f32.mrf.mxu0
        %v595 = vadd.f32 0.0, %v594
        %v596 = vpop.f32.mrf.mxu0
        %597 = vmatprep.mubr.f32.mxu0 0.0
        %598 = vmatmul.mubr.f32.gmra.mxu0 %v439
        %v599 = vpop.f32.mrf.mxu0
        %v600 = vadd.f32 0.0, %v599
        %v601 = vpop.f32.mrf.mxu0
        %602 = vmatprep.mubr.f32.mxu0 0.0
        %603 = vmatmul.mubr.f32.gmra.mxu0 %v444
        %v604 = vpop.f32.mrf.mxu0
        %v605 = vadd.f32 0.0, %v604
        %v606 = vpop.f32.mrf.mxu0
        %607 = vmatprep.mubr.f32.mxu0 0.0
        %608 = vmatmul.mubr.f32.gmra.mxu0 %v449
        %v609 = vpop.f32.mrf.mxu0
        %v610 = vadd.f32 0.0, %v609
        %v611 = vpop.f32.mrf.mxu0
        %612 = vmatprep.mubr.f32.mxu0 0.0
        %613 = vmatmul.mubr.f32.gmra.mxu0 %v454
        %v614 = vpop.f32.mrf.mxu0
        %v615 = vadd.f32 0.0, %v614
        %v616 = vpop.f32.mrf.mxu0
        %617 = vmatprep.mubr.f32.mxu0 0.0
        %618 = vmatmul.mubr.f32.gmra.mxu0 %v459
        %v619 = vpop.f32.mrf.mxu0
        %v620 = vadd.f32 0.0, %v619
        %v621 = vpop.f32.mrf.mxu0
        %622 = vmatprep.mubr.f32.mxu0 0.0
        %623 = vmatmul.mubr.f32.gmra.mxu0 %v464
        %v624 = vpop.f32.mrf.mxu0
        %v625 = vadd.f32 0.0, %v624
        %v626 = vpop.f32.mrf.mxu0
        %627 = vdwg.mxu0
        %v628 = vpack.c.bf16 %v394, %v389
        %v629 = vpack.c.bf16 %v404, %v399
        %v630 = vpack.c.bf16 %v414, %v409
        %v631 = vpack.c.bf16 %v424, %v419
        %v632 = vpack.c.bf16 %v434, %v429
        %v633 = vpack.c.bf16 %v444, %v439
        %v634 = vpack.c.bf16 %v454, %v449
        %v635 = vpack.c.bf16 %v464, %v459
        %v644 = vunpack.c.l.b16 %v628
        %v645 = vunpack.c.h.b16 %v628
        %v646 = vunpack.c.l.b16 %v629
        %v647 = vunpack.c.h.b16 %v629
        %v648 = vunpack.c.l.b16 %v630
        %v649 = vunpack.c.h.b16 %v630
        %v650 = vunpack.c.l.b16 %v631
        %v651 = vunpack.c.h.b16 %v631
        %v652 = vunpack.c.l.b16 %v632
        %v653 = vunpack.c.h.b16 %v632
        %v654 = vunpack.c.l.b16 %v633
        %v655 = vunpack.c.h.b16 %v633
        %v656 = vunpack.c.l.b16 %v634
        %v657 = vunpack.c.h.b16 %v634
        %v658 = vunpack.c.l.b16 %v635
        %v659 = vunpack.c.h.b16 %v635
        %v660 = vpack.c.b16 %v644, %v644
        %v661 = vpack.c.b16 %v645, %v645
        %v662 = vpack.c.b16 %v646, %v646
        %v663 = vpack.c.b16 %v647, %v647
        %v664 = vpack.c.b16 %v648, %v648
        %v665 = vpack.c.b16 %v649, %v649
        %v666 = vpack.c.b16 %v650, %v650
        %v667 = vpack.c.b16 %v651, %v651
        %v668 = vpack.c.b16 %v652, %v652
        %v669 = vpack.c.b16 %v653, %v653
        %v670 = vpack.c.b16 %v654, %v654
        %v671 = vpack.c.b16 %v655, %v655
        %v672 = vpack.c.b16 %v656, %v656
        %v673 = vpack.c.b16 %v657, %v657
        %v674 = vpack.c.b16 %v658, %v658
        %v675 = vpack.c.b16 %v659, %v659
        %692 = vst [vmem:[%s222] sm:$0xf] %v660
        %693 = vst [vmem:[%s222 + $0x4] sm:$0xf] %v661
        %694 = vst [vmem:[%s222 + $0x8] sm:$0xf] %v662
        %695 = vst [vmem:[%s222 + $0xc] sm:$0xf] %v663
        %696 = vst [vmem:[%s222 + $0x10] sm:$0xf] %v664
        %697 = vst [vmem:[%s222 + $0x14] sm:$0xf] %v665
        %698 = vst [vmem:[%s222 + $0x18] sm:$0xf] %v666
        %699 = vst [vmem:[%s222 + $0x1c] sm:$0xf] %v667
        %700 = vst [vmem:[%s222 + $0x20] sm:$0xf] %v668
        %701 = vst [vmem:[%s222 + $0x24] sm:$0xf] %v669
        %702 = vst [vmem:[%s222 + $0x28] sm:$0xf] %v670
        %703 = vst [vmem:[%s222 + $0x2c] sm:$0xf] %v671
        %704 = vst [vmem:[%s222 + $0x30] sm:$0xf] %v672
        %705 = vst [vmem:[%s222 + $0x34] sm:$0xf] %v673
        %706 = vst [vmem:[%s222 + $0x38] sm:$0xf] %v674
        %707 = vst [vmem:[%s222 + $0x3c] sm:$0xf] %v675
        %vm708 = vcmask 7168
        %709 = vst.msk [vmem:[%s247] sm:$0xff] %vm708, %v550
        %710 = vst.msk [vmem:[%s247 + $0x8] sm:$0xff] %vm708, %v555
        %711 = vst.msk [vmem:[%s247 + $0x10] sm:$0xff] %vm708, %v560
        %712 = vst.msk [vmem:[%s247 + $0x18] sm:$0xff] %vm708, %v565
        %713 = vst.msk [vmem:[%s247 + $0x20] sm:$0xff] %vm708, %v570
        %714 = vst.msk [vmem:[%s247 + $0x28] sm:$0xff] %vm708, %v575
        %715 = vst.msk [vmem:[%s247 + $0x30] sm:$0xff] %vm708, %v580
        %716 = vst.msk [vmem:[%s247 + $0x38] sm:$0xff] %vm708, %v585
        %717 = vst.msk [vmem:[%s247 + $0x40] sm:$0xff] %vm708, %v590
        %718 = vst.msk [vmem:[%s247 + $0x48] sm:$0xff] %vm708, %v595
        %719 = vst.msk [vmem:[%s247 + $0x50] sm:$0xff] %vm708, %v600
        %720 = vst.msk [vmem:[%s247 + $0x58] sm:$0xff] %vm708, %v605
        %721 = vst.msk [vmem:[%s247 + $0x60] sm:$0xff] %vm708, %v610
        %722 = vst.msk [vmem:[%s247 + $0x68] sm:$0xff] %vm708, %v615
        %723 = vst.msk [vmem:[%s247 + $0x70] sm:$0xff] %vm708, %v620
        %724 = vst.msk [vmem:[%s247 + $0x78] sm:$0xff] %vm708, %v625
        %741 = vrot.lane.b32.xlu0 %v550, 127
        %v742 = vpop.permute.xlu0 %741
        %743 = vrot.lane.b32.xlu0 %v555, 127
        %v744 = vpop.permute.xlu0 %743
        %745 = vrot.lane.b32.xlu0 %v560, 127
        %v746 = vpop.permute.xlu0 %745
        %747 = vrot.lane.b32.xlu0 %v565, 127
        %v748 = vpop.permute.xlu0 %747
        %749 = vrot.lane.b32.xlu0 %v570, 127
        %v750 = vpop.permute.xlu0 %749
        %751 = vrot.lane.b32.xlu0 %v575, 127
        %v752 = vpop.permute.xlu0 %751
        %753 = vrot.lane.b32.xlu0 %v580, 127
        %v754 = vpop.permute.xlu0 %753
        %755 = vrot.lane.b32.xlu0 %v585, 127
        %v756 = vpop.permute.xlu0 %755
        %757 = vrot.lane.b32.xlu0 %v590, 127
        %v758 = vpop.permute.xlu0 %757
        %759 = vrot.lane.b32.xlu0 %v595, 127
        %v760 = vpop.permute.xlu0 %759
        %761 = vrot.lane.b32.xlu0 %v600, 127
        %v762 = vpop.permute.xlu0 %761
        %763 = vrot.lane.b32.xlu0 %v605, 127
        %v764 = vpop.permute.xlu0 %763
        %765 = vrot.lane.b32.xlu0 %v610, 127
        %v766 = vpop.permute.xlu0 %765
        %767 = vrot.lane.b32.xlu0 %v615, 127
        %v768 = vpop.permute.xlu0 %767
        %769 = vrot.lane.b32.xlu0 %v620, 127
        %v770 = vpop.permute.xlu0 %769
        %771 = vrot.lane.b32.xlu0 %v625, 127
        %v772 = vpop.permute.xlu0 %771
        %789 = vxpose.xlu0.b32.start [1/16] %v742, 128
        %790 = vxpose.xlu0.b32.cont [2/16] %v744, 128
        %791 = vxpose.xlu0.b32.cont [3/16] %v746, 128
        %792 = vxpose.xlu0.b32.cont [4/16] %v748, 128
        %793 = vxpose.xlu0.b32.cont [5/16] %v750, 128
        %794 = vxpose.xlu0.b32.cont [6/16] %v752, 128
        %795 = vxpose.xlu0.b32.cont [7/16] %v754, 128
        %796 = vxpose.xlu0.b32.cont [8/16] %v756, 128
        %797 = vxpose.xlu0.b32.cont [9/16] %v758, 128
        %798 = vxpose.xlu0.b32.cont [10/16] %v760, 128
        %799 = vxpose.xlu0.b32.cont [11/16] %v762, 128
        %800 = vxpose.xlu0.b32.cont [12/16] %v764, 128
        %801 = vxpose.xlu0.b32.cont [13/16] %v766, 128
        %802 = vxpose.xlu0.b32.cont [14/16] %v768, 128
        %803 = vxpose.xlu0.b32.cont [15/16] %v770, 128
        %804 = vxpose.xlu0.b32.end [16/16] %v772, 128
        %v805 = vpop.trf.xlu0
        %v806 = vpop.trf.xlu0
        %v807 = vpop.trf.xlu0
        %v808 = vpop.trf.xlu0
        %v809 = vpop.trf.xlu0
        %v810 = vpop.trf.xlu0
        %v811 = vpop.trf.xlu0
        %v812 = vpop.trf.xlu0
        %v813 = vpop.trf.xlu0
        %v814 = vpop.trf.xlu0
        %v815 = vpop.trf.xlu0
        %v816 = vpop.trf.xlu0
        %v817 = vpop.trf.xlu0
        %v818 = vpop.trf.xlu0
        %v819 = vpop.trf.xlu0
        %v820 = vpop.trf.xlu0
        %821 = vst [vmem:[%s235] sm:$0x1] %v805
        %s822 = sand.u32 %s99, 1
        %s823 = scalar_lea.sflag [#allocation3], %s822
        %s824 = sand.u32 %s99, 1
        %s825 = smul.addr %s824, 64
        %s826 = scalar_lea.vmem [#allocation2], %s825
        %s827 = smul.u32 16, %s23
        %p828 = scmp.lt.s32.totalorder %s827, 31
        %s829 = scalar_select %p828, %s827, 31
        %s830 = smul.addr %s829, 8
        %s831 = scalar_lea.vmem %s4, %s830
        %s832 = sand.u32 %s151, 1
        %s833 = scalar_lea.sflag [#allocation5], %s832
        %s834 = sand.u32 %s151, 1
        %s835 = scalar_lea.vmem [#allocation4], %s834
        // Predicated region
        $region33: #{tpu_custom_call.1} parent=31 // pred_check
          %p836 = pneg %p109
        $region34: #{tpu_custom_call.1} parent=31 // pred_check_branch
          %838 = sbr.rel (%p836) target = $region36
        $region35: #{tpu_custom_call.1} parent=31 // pred_region
          %s839 = smul.u32 16, %s23
          %s841 = ssub.s32 1024, 1024
          %842 = vsyncadd %s823, %s841
          %s843 = smul.addr %s839, 64
          %s844 = scalar_lea.hbm %s3, %s843
          %s845 = sshll.u32 %s826, 4
          %s846 = int_to_ptr.vmem [resolvable:$true] %s845
          %851 = dma.vmem_to_hbm [thread:$0]  %s846, 1024, %s844, %s823, 64, 64, 4
        $region36: #{tpu_custom_call.1} parent=31 // pred_fallthru
          _
        // Predicated region
        $region37: #{tpu_custom_call.1} parent=31 // pred_check
          %p852 = pneg %p135
        $region38: #{tpu_custom_call.1} parent=31 // pred_check_branch
          %854 = sbr.rel (%p852) target = $region40
        $region39: #{tpu_custom_call.1} parent=31 // pred_region
          %s855 = smul.u32 16, %s23
        $region40: #{tpu_custom_call.1} parent=31 // pred_fallthru
          _
        // Predicated region
        $region41: #{tpu_custom_call.1} parent=31 // pred_check
          %p856 = pneg %p161
        $region42: #{tpu_custom_call.1} parent=31 // pred_check_branch
          %858 = sbr.rel (%p856) target = $region44
        $region43: #{tpu_custom_call.1} parent=31 // pred_region
          %s860 = ssub.s32 16, 16
          %861 = vsyncadd %s833, %s860
          %s862 = smul.addr %s23, 16
          %s863 = scalar_lea.hbm %s5, %s862
          %s865 = sshll.u32 %s835, 4
          %s866 = int_to_ptr.vmem [resolvable:$true] %s865
          %868 = dma.vmem_to_hbm [thread:$0]  %s866, 16, %s863, %s833
        $region44: #{tpu_custom_call.1} parent=31 // pred_fallthru
          _
      $region32: #{tpu_custom_call.1} parent=5 // pred_fallthru
        _
      %p869 = scmp.le.s32.totalorder 2, %s18
      // Predicated region
      $region45: #{tpu_custom_call.1} parent=5 // pred_check
        %p870 = pneg %p869
      $region46: #{tpu_custom_call.1} parent=5 // pred_check_branch
        %872 = sbr.rel (%p870) target = $region48
      $region47: #{tpu_custom_call.1} parent=5 // pred_region
        %s873 = ssub.s32 %s18, 2
        // Predicated region
        $region49: #{tpu_custom_call.1} parent=47 // pred_check
          %p874 = pneg %p115
        $region50: #{tpu_custom_call.1} parent=47 // pred_check_branch
          %876 = sbr.rel (%p874) target = $region52
        $region51: #{tpu_custom_call.1} parent=47 // pred_region
          %s877 = sand.u32 %s100, 1
          %s878 = scalar_lea.sflag [#allocation3], %s877
          %s879 = sand.u32 %s100, 1
          %s880 = smul.addr %s879, 64
          %s881 = scalar_lea.vmem [#allocation2], %s880
          %882 = dma.done %s878, 1024
        $region52: #{tpu_custom_call.1} parent=47 // pred_fallthru
          _
        // Predicated region
        $region53: #{tpu_custom_call.1} parent=47 // pred_check
          %p883 = pneg %p141
        $region54: #{tpu_custom_call.1} parent=47 // pred_check_branch
          %885 = sbr.rel (%p883) target = $region56
        $region55: #{tpu_custom_call.1} parent=47 // pred_region
          %s886 = smul.u32 16, %s24
          %p887 = scmp.lt.s32.totalorder %s886, 31
          %s888 = scalar_select %p887, %s886, 31
          %s889 = smul.addr %s888, 8
          %s890 = scalar_lea.vmem %s4, %s889
        $region56: #{tpu_custom_call.1} parent=47 // pred_fallthru
          _
        // Predicated region
        $region57: #{tpu_custom_call.1} parent=47 // pred_check
          %p891 = pneg %p167
        $region58: #{tpu_custom_call.1} parent=47 // pred_check_branch
          %893 = sbr.rel (%p891) target = $region60
        $region59: #{tpu_custom_call.1} parent=47 // pred_region
          %s894 = sand.u32 %s152, 1
          %s895 = scalar_lea.sflag [#allocation5], %s894
          %s896 = sand.u32 %s152, 1
          %s897 = scalar_lea.vmem [#allocation4], %s896
          %898 = dma.done %s895, 16
        $region60: #{tpu_custom_call.1} parent=47 // pred_fallthru
          _
      $region48: #{tpu_custom_call.1} parent=5 // pred_fallthru
        _
    $region6: #{tpu_custom_call.1} parent=1 // loop_footer
      %s22 = sadd.s32 1, %s18
    $region7: #{tpu_custom_call.1} parent=1 // loop_footer_branch
      %17 = sbr.rel target = $region3
    $region8: #{tpu_custom_call.1} parent=1 // loop_exit
      _
    %899 = vsyncpa [#allocation3], 1
    %s900 = scalar_lea.sflag [#allocation3], 1
    %901 = vsyncpa %s900, 1
    %902 = vsyncpa [#allocation5], 1
    %s903 = scalar_lea.sflag [#allocation5], 1
    %904 = vsyncpa %s903, 1

</llo_original>
